<compile_context>
chip_gen: v6e
topology: v6e:2x2x1
jax: 0.10.0
libtpu: 0.0.40
codegen_flags: <defaults>
</compile_context>

<pallas_src>
import math

import jax
import jax.numpy as jnp
import numpy as np
from jax.experimental import pallas as pl
from jax.experimental.pallas import tpu as pltpu

KH = 7    # conv kernel height
PAD = 3   # replicate pad on each side of H


def _round_up(x, m):
    return (x + m - 1) // m * m


def _cdiv(a, b):
    return (a + b - 1) // b


# -----------------------------------------------------------------------------
# One-off probe: does pltpu.roll lower here, and which direction does it shift?
# (jnp.roll convention: out[i] = in[(i - shift) % n])
# -----------------------------------------------------------------------------
_ROLL_MODE = None   # (use_hw_roll: bool, sign: int)


def _probe_kernel(x_ref, o_ref):
    o_ref[...] = pltpu.roll(x_ref[...], 1, axis=0)


def _roll_mode():
    global _ROLL_MODE
    if _ROLL_MODE is None:
        try:
            x = jnp.broadcast_to(jnp.arange(8, dtype=jnp.float32)[:, None],
                                 (8, 128))
            out = pl.pallas_call(
                _probe_kernel,
                out_shape=jax.ShapeDtypeStruct((8, 128), jnp.float32),
            )(x)
            r00 = float(jax.device_get(out)[0, 0])
            if r00 == 7.0:
                _ROLL_MODE = (True, 1)      # matches jnp.roll
            elif r00 == 1.0:
                _ROLL_MODE = (True, -1)     # opposite convention
            else:
                _ROLL_MODE = (False, 1)
        except Exception:
            _ROLL_MODE = (False, 1)         # fall back to jnp.roll in-kernel
    return _ROLL_MODE


# -----------------------------------------------------------------------------
# Fold taps + replicate padding into per-output-row weights for each rolled term
# -----------------------------------------------------------------------------
def _row_weights(weight, H):
    """Returns (H, KH) f32: row h, column kp = coefficient applied to the term
    delivering x[h + kp - PAD] (always a valid in-slice row when nonzero)."""
    sel = np.zeros((H, KH, KH), np.float32)
    for h in range(H):
        for k in range(KH):
            src = min(max(h + k - PAD, 0), H - 1)   # replicate-pad clamping
            sel[h, src - h + PAD, k] += 1.0
    taps = weight.reshape(KH).astype(jnp.float32)
    return jnp.einsum("hpk,k->hp", jnp.asarray(sel), taps)


def _make_kernel(use_hw_roll, sign):
    def kernel(wcol_ref, x_ref, o_ref):
        bh = x_ref.shape[0]
        x = x_ref[...].astype(jnp.float32)      # (BH, TW)
        wc = wcol_ref[...]                      # (BH, KH) per-row tap weights
        acc = wc[:, PAD:PAD + 1] * x            # center tap: no shift
        for k in range(KH):
            if k == PAD:
                continue
            s = (sign * (PAD - k)) % bh
            if s == 0:
                term = x
            elif use_hw_roll:
                term = pltpu.roll(x, s, axis=0)   # XLU sublane rotation
            else:
                term = jnp.roll(x, s, axis=0)     # fallback (concat of 2 slices)
            acc = acc + wc[:, k:k + 1] * term
        o_ref[...] = acc.astype(o_ref.dtype)
    return kernel


def forfilter(x, weight):
    """x: (N, C, H, W); weight: (1, 1, 7, 1) Conv2d(1,1,(7,1),bias=False) filter."""
    N, C, H, W = x.shape
    NC = N * C
    itemsize = jnp.dtype(x.dtype).itemsize
    use_hw_roll, sign = _roll_mode()

    # ---- generation-aware VMEM budget ---------------------------------------
    try:
        vmem_cap = int(pltpu.get_tpu_info().vmem_capacity_bytes)
    except Exception:
        vmem_cap = 64 * 1024 * 1024                     # conservative (v7x-sized)
    vmem_limit = (vmem_cap * 3) // 4                    # 96 MiB v5e/v6e, 48 MiB v7x
    block_budget = vmem_limit // 10                     # ~9.6 MiB / ~4.8 MiB

    def per_row_bytes(tw):
        # 2x in + 2x out double buffers (x dtype) + ~3 f32 temporaries + weight cols
        lanes = _round_up(tw, 128)
        return 4 * lanes * itemsize + 3 * lanes * 4 + 2 * 128 * 4

    m = 8 // math.gcd(H, 8)        # slices per block must be a multiple of m (sublane 8)
    min_rows = min(m, NC) * H

    # ---- optional lane (W) tiling, only if one minimal row-block is too big ----
    tw = W
    if W % 128 == 0 and per_row_bytes(W) * min_rows > block_budget:
        lane_budget = max(block_budget // min_rows - 2 * 128 * 4,
                          4 * 128 * itemsize)
        tw = min(W, max(128, lane_budget // (4 * itemsize + 12) // 128 * 128))
    n_w = _cdiv(W, tw)

    # ---- rows per block: fill the budget, keep >= 8 grid steps when possible ----
    steps_target = 8                                    # >= 4 per TC on 2-TC v7x
    tb = max(1, (block_budget // per_row_bytes(tw)) // H)
    tb = min(tb, max(1, _cdiv(NC, max(1, _cdiv(steps_target, n_w)))))
    if tb < NC:
        tb = max(m, tb // m * m)                        # sublane (8) alignment
    if tb >= NC or (tb * H) % 8 != 0:
        tb = NC                                         # full-extent block is always legal
    bh = tb * H
    n_rows = _cdiv(NC, tb)

    wcols = jnp.tile(_row_weights(weight, H), (tb, 1))  # (tb*H, KH), resident
    x2d = x.reshape(NC * H, W)                          # free reshape

    out = pl.pallas_call(
        _make_kernel(use_hw_roll, sign),
        out_shape=jax.ShapeDtypeStruct((NC * H, W), x.dtype),
        grid_spec=pltpu.PrefetchScalarGridSpec(
            num_scalar_prefetch=0,
            grid=(n_rows, n_w),
            in_specs=[
                pl.BlockSpec((bh, KH), lambda i, j: (0, 0)),   # row weights (constant)
                pl.BlockSpec((bh, tw), lambda i, j: (i, j)),   # x block
            ],
            out_specs=pl.BlockSpec((bh, tw), lambda i, j: (i, j)),
        ),
        compiler_params=pltpu.CompilerParams(
            dimension_semantics=("parallel", "parallel"),
            vmem_limit_bytes=vmem_limit,
        ),
    )(wcols, x2d)
    return out.reshape(N, C, H, W)


def _reference(x, weight):
    """Pure-JAX reference of the PyTorch forward."""
    taps = weight.reshape(KH).astype(jnp.float32)
    xp = jnp.pad(x, ((0, 0), (0, 0), (PAD, PAD), (0, 0)), mode="edge")
    H = x.shape[2]
    out = jnp.zeros(x.shape, jnp.float32)
    for k in range(KH):
        out = out + taps[k] * xp[:, :, k:k + H, :].astype(jnp.float32)
    return out.astype(x.dtype)


if __name__ == "__main__":
    key = jax.random.PRNGKey(0)
    kx, kw = jax.random.split(key)

    N, C, H, W = 2, 4, 16, 16     # small NCHW input; C == inplanes
    x = jax.random.normal(kx, (N, C, H, W), dtype=jnp.float32)

    # Conv2d(1, 1, (7, 1), bias=False)-style weight (PyTorch uniform init bound).
    fan_in = 1 * KH * 1
    bound = 1.0 / (fan_in ** 0.5)
    weight = jax.random.uniform(kw, (1, 1, KH, 1), dtype=jnp.float32,
                                minval=-bound, maxval=bound)

    out = forfilter(x, weight)
    jax.block_until_ready(out)

    ref = _reference(x, weight)
    assert out.shape == (N, C, H, W)
    assert jnp.allclose(out, ref, atol=1e-5, rtol=1e-5), \
        float(jnp.max(jnp.abs(out - ref)))

    print("KERNEL_OK")
</pallas_src>

<mosaic_0001>
module attributes {stable_mosaic.version = 11 : i64} {
  func.func @_probe_kernel(%arg0: memref<8x128xf32, #tpu.memory_space<vmem>>, %arg1: memref<8x128xf32, #tpu.memory_space<vmem>>) attributes {dimension_semantics = [], scalar_prefetch = 0 : i64, scratch_operands = 0 : i64, tpu.core_type = #tpu.core_type<tc>} {
    %c0 = arith.constant 0 : index
    %c0_0 = arith.constant 0 : index
    %0 = vector.load %arg0[%c0, %c0_0] : memref<8x128xf32, #tpu.memory_space<vmem>>, vector<8x128xf32>
    %c1_i32 = arith.constant 1 : i32
    %1 = tpu.dynamic_rotate %0 by %c1_i32 dim 0 : vector<8x128xf32>, i32 -> vector<8x128xf32>
    %c0_1 = arith.constant 0 : index
    %c0_2 = arith.constant 0 : index
    %2 = vector.load %arg1[%c0_1, %c0_2] : memref<8x128xf32, #tpu.memory_space<vmem>>, vector<8x128xf32>
    tpu.vector_store %arg1[%c0_1, %c0_2], %1 {strides = array<i32>} : memref<8x128xf32, #tpu.memory_space<vmem>>, vector<8x128xf32>,
    return
  }
}

module attributes {stable_mosaic.version = 11 : i64} {
  func.func @kernel(%arg0: i32, %arg1: i32, %arg2: memref<16x7xf32, #tpu.memory_space<vmem>>, %arg3: memref<16x16xf32, #tpu.memory_space<vmem>>, %arg4: memref<16x16xf32, #tpu.memory_space<vmem>>) attributes {dimension_semantics = [#tpu.dimension_semantics<parallel>, #tpu.dimension_semantics<parallel>], iteration_bounds = array<i64: 8, 1>, scalar_prefetch = 0 : i64, scratch_operands = 0 : i64, tpu.core_type = #tpu.core_type<tc>, window_params = [{pipeline_mode = #tpu.pipeline_mode<synchronous>, transform_indices = @transform_0, window_bounds = array<i64: 16, 7>}, {transform_indices = @transform_1, window_bounds = array<i64: 16, 16>}, {transform_indices = @transform_2, window_bounds = array<i64: 16, 16>}]} {
    %c0 = arith.constant 0 : index
    %c0_0 = arith.constant 0 : index
    %0 = vector.load %arg3[%c0, %c0_0] : memref<16x16xf32, #tpu.memory_space<vmem>>, vector<16x16xf32>
    %c0_1 = arith.constant 0 : index
    %c0_2 = arith.constant 0 : index
    %1 = vector.load %arg2[%c0_1, %c0_2] : memref<16x7xf32, #tpu.memory_space<vmem>>, vector<16x7xf32>
    %2 = vector.extract_strided_slice %1 {offsets = [0, 3], sizes = [16, 1], strides = [1, 1]} : vector<16x7xf32> to vector<16x1xf32>
    %3 = vector.broadcast %2 : vector<16x1xf32> to vector<16x16xf32>
    %4 = arith.mulf %3, %0 : vector<16x16xf32>
    %5 = vector.extract_strided_slice %0 {offsets = [13, 0], sizes = [3, 16], strides = [1, 1]} : vector<16x16xf32> to vector<3x16xf32>
    %6 = vector.extract_strided_slice %0 {offsets = [0, 0], sizes = [13, 16], strides = [1, 1]} : vector<16x16xf32> to vector<13x16xf32>
    %7 = tpu.concatenate %5, %6 in 0 : vector<3x16xf32>, vector<13x16xf32> -> vector<16x16xf32>
    %8 = vector.extract_strided_slice %1 {offsets = [0, 0], sizes = [16, 1], strides = [1, 1]} : vector<16x7xf32> to vector<16x1xf32>
    %9 = vector.broadcast %8 : vector<16x1xf32> to vector<16x16xf32>
    %10 = arith.mulf %9, %7 : vector<16x16xf32>
    %11 = arith.addf %4, %10 : vector<16x16xf32>
    %12 = vector.extract_strided_slice %0 {offsets = [14, 0], sizes = [2, 16], strides = [1, 1]} : vector<16x16xf32> to vector<2x16xf32>
    %13 = vector.extract_strided_slice %0 {offsets = [0, 0], sizes = [14, 16], strides = [1, 1]} : vector<16x16xf32> to vector<14x16xf32>
    %14 = tpu.concatenate %12, %13 in 0 : vector<2x16xf32>, vector<14x16xf32> -> vector<16x16xf32>
    %15 = vector.extract_strided_slice %1 {offsets = [0, 1], sizes = [16, 1], strides = [1, 1]} : vector<16x7xf32> to vector<16x1xf32>
    %16 = vector.broadcast %15 : vector<16x1xf32> to vector<16x16xf32>
    %17 = arith.mulf %16, %14 : vector<16x16xf32>
    %18 = arith.addf %11, %17 : vector<16x16xf32>
    %19 = vector.extract_strided_slice %0 {offsets = [15, 0], sizes = [1, 16], strides = [1, 1]} : vector<16x16xf32> to vector<1x16xf32>
    %20 = vector.extract_strided_slice %0 {offsets = [0, 0], sizes = [15, 16], strides = [1, 1]} : vector<16x16xf32> to vector<15x16xf32>
    %21 = tpu.concatenate %19, %20 in 0 : vector<1x16xf32>, vector<15x16xf32> -> vector<16x16xf32>
    %22 = vector.extract_strided_slice %1 {offsets = [0, 2], sizes = [16, 1], strides = [1, 1]} : vector<16x7xf32> to vector<16x1xf32>
    %23 = vector.broadcast %22 : vector<16x1xf32> to vector<16x16xf32>
    %24 = arith.mulf %23, %21 : vector<16x16xf32>
    %25 = arith.addf %18, %24 : vector<16x16xf32>
    %26 = vector.extract_strided_slice %0 {offsets = [1, 0], sizes = [15, 16], strides = [1, 1]} : vector<16x16xf32> to vector<15x16xf32>
    %27 = vector.extract_strided_slice %0 {offsets = [0, 0], sizes = [1, 16], strides = [1, 1]} : vector<16x16xf32> to vector<1x16xf32>
    %28 = tpu.concatenate %26, %27 in 0 : vector<15x16xf32>, vector<1x16xf32> -> vector<16x16xf32>
    %29 = vector.extract_strided_slice %1 {offsets = [0, 4], sizes = [16, 1], strides = [1, 1]} : vector<16x7xf32> to vector<16x1xf32>
    %30 = vector.broadcast %29 : vector<16x1xf32> to vector<16x16xf32>
    %31 = arith.mulf %30, %28 : vector<16x16xf32>
    %32 = arith.addf %25, %31 : vector<16x16xf32>
    %33 = vector.extract_strided_slice %0 {offsets = [2, 0], sizes = [14, 16], strides = [1, 1]} : vector<16x16xf32> to vector<14x16xf32>
    %34 = vector.extract_strided_slice %0 {offsets = [0, 0], sizes = [2, 16], strides = [1, 1]} : vector<16x16xf32> to vector<2x16xf32>
    %35 = tpu.concatenate %33, %34 in 0 : vector<14x16xf32>, vector<2x16xf32> -> vector<16x16xf32>
    %36 = vector.extract_strided_slice %1 {offsets = [0, 5], sizes = [16, 1], strides = [1, 1]} : vector<16x7xf32> to vector<16x1xf32>
    %37 = vector.broadcast %36 : vector<16x1xf32> to vector<16x16xf32>
    %38 = arith.mulf %37, %35 : vector<16x16xf32>
    %39 = arith.addf %32, %38 : vector<16x16xf32>
    %40 = vector.extract_strided_slice %0 {offsets = [3, 0], sizes = [13, 16], strides = [1, 1]} : vector<16x16xf32> to vector<13x16xf32>
    %41 = vector.extract_strided_slice %0 {offsets = [0, 0], sizes = [3, 16], strides = [1, 1]} : vector<16x16xf32> to vector<3x16xf32>
    %42 = tpu.concatenate %40, %41 in 0 : vector<13x16xf32>, vector<3x16xf32> -> vector<16x16xf32>
    %43 = vector.extract_strided_slice %1 {offsets = [0, 6], sizes = [16, 1], strides = [1, 1]} : vector<16x7xf32> to vector<16x1xf32>
    %44 = vector.broadcast %43 : vector<16x1xf32> to vector<16x16xf32>
    %45 = arith.mulf %44, %42 : vector<16x16xf32>
    %46 = arith.addf %39, %45 : vector<16x16xf32>
    %c0_3 = arith.constant 0 : index
    %c0_4 = arith.constant 0 : index
    %47 = vector.load %arg4[%c0_3, %c0_4] : memref<16x16xf32, #tpu.memory_space<vmem>>, vector<16x16xf32>
    tpu.vector_store %arg4[%c0_3, %c0_4], %46 {strides = array<i32>} : memref<16x16xf32, #tpu.memory_space<vmem>>, vector<16x16xf32>,
    return
  }
  func.func @transform_0(%arg0: i32, %arg1: i32) -> (i32, i32) {
    %c0_i32 = arith.constant 0 : i32
    %c0_i32_0 = arith.constant 0 : i32
    %c0_i32_1 = arith.constant 0 : i32
    return %c0_i32, %c0_i32_0 : i32, i32
  }
  func.func @transform_1(%arg0: i32, %arg1: i32) -> (i32, i32) {
    %c0_i32 = arith.constant 0 : i32
    return %arg0, %arg1 : i32, i32
  }
  func.func @transform_2(%arg0: i32, %arg1: i32) -> (i32, i32) {
    %c0_i32 = arith.constant 0 : i32
    return %arg0, %arg1 : i32, i32
  }
}

</mosaic_0001>

<llo_original>
// kernel: tpu_custom_call.1
$region0: #{tpu_custom_call.1}
  #allocation0 [shape = 'u32[]', space=smem, size = 0x4, offset = 0x4, fixed_abs, tag = 'smem constant byte address 0x4 - core index']
  #allocation1 [shape = 'u32[144,128]{1,0:T(1,128)}', space=vmem, size = 0x12000, scoped, tag = 'internal scratch']
  %s0 = inlined_call_operand.hbm [shape: f32[8,128], index: 0, kind: input, shape index: {}]
  %s1 = inlined_call_operand.hbm [shape: f32[8,128], index: 1, kind: output, shape index: {}]
  %s2 = sld [smem:[#allocation0]]
  $region18: #{tpu_custom_call.1} parent=0
    _
  %s4 = ssub.s32 1, %s2
  %s5 = scalar_select 0, %s4, %s2
  $region1: #{tpu_custom_call.1} parent=0
    #allocation2 [shape = 'u8[4096]{0}', space=vmem, size = 0x1000, scoped, tag = 'input window, operand 0, single buffered']
    #allocation3 [shape = 's32[1]{0}', space=sflag, size = 0x4, scoped, tag = 'scoped memory for tpu_custom_call.1']
    #allocation4 [shape = 's32[1]{0}', space=sflag, size = 0x4, scoped, tag = 'scoped memory for tpu_custom_call.1']
    #allocation5 [shape = 'u8[4096]{0}', space=vmem, size = 0x1000, scoped, tag = 'output window, operand 0, single buffered']
    %6 = vsyncpa [#allocation3], 0
    %7 = vsyncpa [#allocation4], 0
    // Predicated region
    $region2: #{tpu_custom_call.1} parent=1 // pred_check
      _
    $region3: #{tpu_custom_call.1} parent=1 // pred_check_branch
      %9 = sbr.rel (0) target = $region5
    $region4: #{tpu_custom_call.1} parent=1 // pred_region
      %s11 = ssub.s32 128, 128
      %12 = vsyncadd [#allocation3], %s11
      %s14 = sshll.u32 [#allocation2], 4
      %s15 = int_to_ptr.vmem [resolvable:$true] %s14
      %17 = dma.hbm_to_vmem [thread:$0]  %s0, 128, %s15, [#allocation3]
    $region5: #{tpu_custom_call.1} parent=1 // pred_fallthru
      _
    // Predicated region
    $region6: #{tpu_custom_call.1} parent=1 // pred_check
      _
    $region7: #{tpu_custom_call.1} parent=1 // pred_check_branch
      %19 = sbr.rel (0) target = $region9
    $region8: #{tpu_custom_call.1} parent=1 // pred_region
      %20 = dma.done [#allocation3], 128
    $region9: #{tpu_custom_call.1} parent=1 // pred_fallthru
      _
    %v21 = vld [vmem:[#allocation2] sm:$0xff]
    %v22 = vrot.slane %v21, 7
    %23 = vst [vmem:[#allocation5] sm:$0xff] %v22
    // Predicated region
    $region10: #{tpu_custom_call.1} parent=1 // pred_check
      _
    $region11: #{tpu_custom_call.1} parent=1 // pred_check_branch
      %25 = sbr.rel (0) target = $region13
    $region12: #{tpu_custom_call.1} parent=1 // pred_region
      %s27 = ssub.s32 128, 128
      %28 = vsyncadd [#allocation4], %s27
      %s30 = sshll.u32 [#allocation5], 4
      %s31 = int_to_ptr.vmem [resolvable:$true] %s30
      %33 = dma.vmem_to_hbm [thread:$0]  %s31, 128, %s1, [#allocation4]
    $region13: #{tpu_custom_call.1} parent=1 // pred_fallthru
      _
    // Predicated region
    $region14: #{tpu_custom_call.1} parent=1 // pred_check
      _
    $region15: #{tpu_custom_call.1} parent=1 // pred_check_branch
      %35 = sbr.rel (0) target = $region17
    $region16: #{tpu_custom_call.1} parent=1 // pred_region
      %36 = dma.done [#allocation4], 128
    $region17: #{tpu_custom_call.1} parent=1 // pred_fallthru
      _
    %37 = vsyncpa [#allocation3], 1
    %38 = vsyncpa [#allocation4], 1

// kernel: tpu_custom_call.1
$region0: #{tpu_custom_call.1}
  #allocation0 [shape = 'u32[]', space=smem, size = 0x4, offset = 0x4, fixed_abs, tag = 'smem constant byte address 0x4 - core index']
  #allocation1 [shape = 'u32[144,128]{1,0:T(1,128)}', space=vmem, size = 0x12000, scoped, tag = 'internal scratch']
  %s0 = inlined_call_operand.vmem [shape: f32[16,7], index: 0, kind: input, shape index: {}]
  %s1 = inlined_call_operand.vmem [shape: f32[128,16], index: 1, kind: input, shape index: {}]
  %s2 = inlined_call_operand.vmem [shape: f32[128,16], index: 2, kind: output, shape index: {}]
  %s3 = sld [smem:[#allocation0]]
  $region41: #{tpu_custom_call.1} parent=0
    _
  %s5 = ssub.s32 1, %s3
  %s6 = scalar_select 0, %s5, %s3
  loop: start=0, step=1, limit=10
  $region2: #{tpu_custom_call.1} parent=0 // loop_pre_header
    _
  $region3: #{tpu_custom_call.1} parent=0 // loop_header
    %s8 = sphi 0, %s12
    %p9 = scmp.ge.s32.totalorder %s8, 10
    %s15 = sphi 0, %s27
    %s16 = sphi 0, %s23
    %s17 = sphi 0, %s15
    %s18 = sphi 0, %s16
    %s19 = sphi 0, %s17
    %s20 = sphi 0, %s18
    %s28 = sphi 0, %s28
    %s30 = sphi 0, %s28
    %s31 = sphi 0, %s30
    %s45 = sphi 0, %s31
    %s53 = sphi 0, %s55
    %s56 = sphi 0, %s53
    %s57 = sphi 0, %s56
    %s73 = sphi 0, %s57
    %s81 = sphi 0, %s83
    %s84 = sphi 0, %s81
    %s85 = sphi 0, %s84
    %s101 = sphi 0, %s85
  $region4: #{tpu_custom_call.1} parent=0 // loop_header_branch
    %11 = sbr.rel (%p9) target = $region8
  $region5: #{tpu_custom_call.1} parent=0 // loop_body
    %s13 = ssub.s32 %s8, 1
    %s14 = ssub.s32 %s8, 2
    %s21 = sadd.s32 1, %s16
    %p22 = scmp.ge.s32.totalorder %s21, 1
    %s23 = scalar_select %p22, 0, %s21
    %s24 = sadd.s32 1, %s15
    %s25 = scalar_select %p22, %s24, %s15
    %p26 = scmp.ge.s32.totalorder %s25, 8
    %s27 = scalar_select %p26, 0, %s25
    %s29 = sadd.s32 %s28, 1
    %p32 = scmp.eq.s32.totalorder %s8, 7
    %p33 = scmp.ne.s32.totalorder %s28, %s30
    %p34 = scmp.eq.s32.totalorder %s8, 0
    %p35 = por %p33, %p34
    %p36 = scmp.ne.s32.totalorder %s28, %s30
    %p37 = scmp.eq.s32.totalorder %s13, 7
    %p38 = por %p36, %p37
    %p39 = scmp.ne.s32.totalorder %s30, %s31
    %p40 = scmp.eq.s32.totalorder %s13, 0
    %p41 = por %p39, %p40
    %p42 = scmp.ne.s32.totalorder %s30, %s31
    %p43 = scmp.eq.s32.totalorder %s14, 7
    %p44 = por %p42, %p43
    %p46 = scmp.ne.s32.totalorder %s31, %s45
    %p47 = scmp.eq.s32.totalorder %s14, 0
    %p48 = por %p46, %p47
    %s49 = ssub.s32 %s15, %s27
    %s50 = ssub.s32 %s16, %s23
    %s51 = sor.u32 %s49, %s50
    %p52 = scmp.eq.s32.totalorder %s51, 0
    %s54 = sadd.s32 %s53, 1
    %s55 = scalar_select %p52, %s53, %s54
    %p58 = pneg %p52
    %p59 = scmp.eq.s32.totalorder %s8, 7
    %p60 = por %p58, %p59
    %p61 = scmp.ne.s32.totalorder %s53, %s56
    %p62 = scmp.eq.s32.totalorder %s8, 0
    %p63 = por %p61, %p62
    %p64 = scmp.ne.s32.totalorder %s53, %s56
    %p65 = scmp.eq.s32.totalorder %s13, 7
    %p66 = por %p64, %p65
    %p67 = scmp.ne.s32.totalorder %s56, %s57
    %p68 = scmp.eq.s32.totalorder %s13, 0
    %p69 = por %p67, %p68
    %p70 = scmp.ne.s32.totalorder %s56, %s57
    %p71 = scmp.eq.s32.totalorder %s14, 7
    %p72 = por %p70, %p71
    %p74 = scmp.ne.s32.totalorder %s57, %s73
    %p75 = scmp.eq.s32.totalorder %s14, 0
    %p76 = por %p74, %p75
    %s77 = ssub.s32 %s15, %s27
    %s78 = ssub.s32 %s16, %s23
    %s79 = sor.u32 %s77, %s78
    %p80 = scmp.eq.s32.totalorder %s79, 0
    %s82 = sadd.s32 %s81, 1
    %s83 = scalar_select %p80, %s81, %s82
    %p86 = pneg %p80
    %p87 = scmp.eq.s32.totalorder %s8, 7
    %p88 = por %p86, %p87
    %p89 = scmp.ne.s32.totalorder %s81, %s84
    %p90 = scmp.eq.s32.totalorder %s8, 0
    %p91 = por %p89, %p90
    %p92 = scmp.ne.s32.totalorder %s81, %s84
    %p93 = scmp.eq.s32.totalorder %s13, 7
    %p94 = por %p92, %p93
    %p95 = scmp.ne.s32.totalorder %s84, %s85
    %p96 = scmp.eq.s32.totalorder %s13, 0
    %p97 = por %p95, %p96
    %p98 = scmp.ne.s32.totalorder %s84, %s85
    %p99 = scmp.eq.s32.totalorder %s14, 7
    %p100 = por %p98, %p99
    %p102 = scmp.ne.s32.totalorder %s85, %s101
    %p103 = scmp.eq.s32.totalorder %s14, 0
    %p104 = por %p102, %p103
    %p105 = scmp.le.s32.totalorder 1, %s8
    %p106 = scmp.lt.s32.totalorder %s8, 9
    %p107 = pnand %p105, %p106
    %p108 = pneg %p107
    // Predicated region
    $region9: #{tpu_custom_call.1} parent=5 // pred_check
      _
    $region10: #{tpu_custom_call.1} parent=5 // pred_check_branch
      %110 = sbr.rel (%p107) target = $region12
    $region11: #{tpu_custom_call.1} parent=5 // pred_region
      %s111 = ssub.s32 %s8, 1
      // Predicated region
      $region13: #{tpu_custom_call.1} parent=11 // pred_check
        %p112 = pneg %p41
      $region14: #{tpu_custom_call.1} parent=11 // pred_check_branch
        %114 = sbr.rel (%p112) target = $region16
      $region15: #{tpu_custom_call.1} parent=11 // pred_region
        _
      $region16: #{tpu_custom_call.1} parent=11 // pred_fallthru
        _
    $region12: #{tpu_custom_call.1} parent=5 // pred_fallthru
      _
    %p115 = scmp.lt.s32.totalorder %s8, 8
    // Predicated region
    $region17: #{tpu_custom_call.1} parent=5 // pred_check
      %p116 = pneg %p115
    $region18: #{tpu_custom_call.1} parent=5 // pred_check_branch
      %118 = sbr.rel (%p116) target = $region20
    $region19: #{tpu_custom_call.1} parent=5 // pred_region
      // Predicated region
      $region21: #{tpu_custom_call.1} parent=19 // pred_check
        %p119 = pneg %p63
      $region22: #{tpu_custom_call.1} parent=19 // pred_check_branch
        %121 = sbr.rel (%p119) target = $region24
      $region23: #{tpu_custom_call.1} parent=19 // pred_region
        %s122 = smul.u32 2, %s15
        %p123 = scmp.lt.s32.totalorder %s122, 15
        %s124 = scalar_select %p123, %s122, 15
        %p125 = scmp.lt.s32.totalorder %s16, 0
        %s126 = scalar_select %p125, %s16, 0
        %s127 = sadd.s32 %s126, %s124
        %s128 = smul.addr %s127, 8
        %s129 = scalar_lea.vmem %s1, %s128
        %s130 = smul.u32 2, %s15
      $region24: #{tpu_custom_call.1} parent=19 // pred_fallthru
        _
    $region20: #{tpu_custom_call.1} parent=5 // pred_fallthru
      _
    %p131 = scmp.le.s32.totalorder 1, %s8
    %p132 = scmp.lt.s32.totalorder %s8, 9
    %p133 = pnand %p131, %p132
    %p134 = pneg %p133
    // Predicated region
    $region25: #{tpu_custom_call.1} parent=5 // pred_check
      _
    $region26: #{tpu_custom_call.1} parent=5 // pred_check_branch
      %136 = sbr.rel (%p133) target = $region28
    $region27: #{tpu_custom_call.1} parent=5 // pred_region
      %s137 = ssub.s32 %s8, 1
      %p138 = pneg %p41
      %p139 = pneg %p38
      %s140 = smul.u32 2, %s17
      %p141 = scmp.lt.s32.totalorder %s140, 15
      %s142 = scalar_select %p141, %s140, 15
      %p143 = scmp.lt.s32.totalorder %s18, 0
      %s144 = scalar_select %p143, %s18, 0
      %s145 = sadd.s32 %s144, %s142
      %s146 = smul.addr %s145, 8
      %s147 = scalar_lea.vmem %s1, %s146
      %p148 = pneg %p69
      %p149 = pneg %p66
      %p150 = pneg %p97
      %p151 = pneg %p94
      %s152 = smul.u32 2, %s17
      %p153 = scmp.lt.s32.totalorder %s152, 15
      %s154 = scalar_select %p153, %s152, 15
      %p155 = scmp.lt.s32.totalorder %s18, 0
      %s156 = scalar_select %p155, %s18, 0
      %s157 = sadd.s32 %s156, %s154
      %s158 = smul.addr %s157, 8
      %s159 = scalar_lea.vmem %s2, %s158
      %s160 = smul.u32 2, %s17
      %p161 = scmp.lt.s32.totalorder %s160, 15
      %s162 = scalar_select %p161, %s160, 15
      %p163 = scmp.lt.s32.totalorder %s18, 0
      %s164 = scalar_select %p163, %s18, 0
      %s165 = sadd.s32 %s164, %s162
      %s166 = smul.addr %s165, 8
      %s167 = scalar_lea.vmem %s1, %s166
      %s168 = smul.u32 2, %s17
      %s169 = smul.u32 2, %s17
      %p170 = scmp.lt.s32.totalorder %s169, 15
      %s171 = scalar_select %p170, %s169, 15
      %p172 = scmp.lt.s32.totalorder %s18, 0
      %s173 = scalar_select %p172, %s18, 0
      %s174 = sadd.s32 %s173, %s171
      %s175 = smul.addr %s174, 8
      %s176 = scalar_lea.vmem %s2, %s175
      %s177 = smul.u32 2, %s17
      %v178 = vld [vmem:[%s167] sm:$0xff]
      %v179 = vld [vmem:[%s167 + $0x8] sm:$0xff]
      %v180 = vld [vmem:[%s0] sm:$0xff]
      %v181 = vld [vmem:[%s0 + $0x8] sm:$0xff]
      %183 = vset.pattern.permute.xlu0 3
      %184 = vperm.xlu0 %183, %v180
      %v185 = vpop.permute.xlu0 %184
      %188 = vset.pattern.permute.xlu0 3
      %189 = vperm.xlu0 %188, %v181
      %v190 = vpop.permute.xlu0 %189
      %v192 = vmul.f32 %v185, %v178
      %v193 = vmul.f32 %v190, %v179
      %v195 = vrot.slane %v179, 5
      %vm198 = vcmask 1042432
      %v199 = vrot.slane %v178, 5
      %v200 = vsel %vm198, %v199, %v195
      %v203 = vsel %vm198, %v195, %v199
      %204 = vset.pattern.permute.xlu0 0
      %205 = vperm.xlu0 %204, %v180
      %v206 = vpop.permute.xlu0 %205
      %208 = vset.pattern.permute.xlu0 0
      %209 = vperm.xlu0 %208, %v181
      %v210 = vpop.permute.xlu0 %209
      %v212 = vmul.f32 %v206, %v203
      %v213 = vmul.f32 %v210, %v200
      %v214 = vadd.f32 %v192, %v212
      %v215 = vadd.f32 %v193, %v213
      %v216 = vrot.slane %v179, 6
      %vm218 = vcmask 1041408
      %v219 = vrot.slane %v178, 6
      %v220 = vsel %vm218, %v219, %v216
      %v223 = vsel %vm218, %v216, %v219
      %224 = vset.pattern.permute.xlu0 1
      %225 = vperm.xlu0 %224, %v180
      %v226 = vpop.permute.xlu0 %225
      %228 = vset.pattern.permute.xlu0 1
      %229 = vperm.xlu0 %228, %v181
      %v230 = vpop.permute.xlu0 %229
      %v232 = vmul.f32 %v226, %v223
      %v233 = vmul.f32 %v230, %v220
      %v234 = vadd.f32 %v214, %v232
      %v235 = vadd.f32 %v215, %v233
      %v236 = vrot.slane %v179, 7
      %vm238 = vcmask 1040384
      %v239 = vrot.slane %v178, 7
      %v240 = vsel %vm238, %v239, %v236
      %v243 = vsel %vm238, %v236, %v239
      %244 = vset.pattern.permute.xlu0 2
      %245 = vperm.xlu0 %244, %v180
      %v246 = vpop.permute.xlu0 %245
      %248 = vset.pattern.permute.xlu0 2
      %249 = vperm.xlu0 %248, %v181
      %v250 = vpop.permute.xlu0 %249
      %v252 = vmul.f32 %v246, %v243
      %v253 = vmul.f32 %v250, %v240
      %v254 = vadd.f32 %v234, %v252
      %v255 = vadd.f32 %v235, %v253
      %vm256 = vcmask 1046528
      %v257 = vrot.slane %v178, 1
      %v258 = vrot.slane %v179, 1
      %v259 = vsel %vm256, %v257, %v258
      %v263 = vsel %vm256, %v258, %v257
      %264 = vset.pattern.permute.xlu0 4
      %265 = vperm.xlu0 %264, %v180
      %v266 = vpop.permute.xlu0 %265
      %268 = vset.pattern.permute.xlu0 4
      %269 = vperm.xlu0 %268, %v181
      %v270 = vpop.permute.xlu0 %269
      %v272 = vmul.f32 %v266, %v259
      %v273 = vmul.f32 %v270, %v263
      %v274 = vadd.f32 %v254, %v272
      %v275 = vadd.f32 %v255, %v273
      %vm276 = vcmask 1045504
      %v277 = vrot.slane %v178, 2
      %v278 = vrot.slane %v179, 2
      %v279 = vsel %vm276, %v277, %v278
      %v283 = vsel %vm276, %v278, %v277
      %284 = vset.pattern.permute.xlu0 5
      %285 = vperm.xlu0 %284, %v180
      %v286 = vpop.permute.xlu0 %285
      %288 = vset.pattern.permute.xlu0 5
      %289 = vperm.xlu0 %288, %v181
      %v290 = vpop.permute.xlu0 %289
      %v292 = vmul.f32 %v286, %v279
      %v293 = vmul.f32 %v290, %v283
      %v294 = vadd.f32 %v274, %v292
      %v295 = vadd.f32 %v275, %v293
      %vm296 = vcmask 1044480
      %v297 = vrot.slane %v178, 3
      %v298 = vrot.slane %v179, 3
      %v299 = vsel %vm296, %v297, %v298
      %v303 = vsel %vm296, %v298, %v297
      %304 = vset.pattern.permute.xlu0 6
      %305 = vperm.xlu0 %304, %v180
      %v306 = vpop.permute.xlu0 %305
      %308 = vset.pattern.permute.xlu0 6
      %309 = vperm.xlu0 %308, %v181
      %v310 = vpop.permute.xlu0 %309
      %v312 = vmul.f32 %v306, %v299
      %v313 = vmul.f32 %v310, %v303
      %v314 = vadd.f32 %v294, %v312
      %v315 = vadd.f32 %v295, %v313
      %vm316 = vcmask 130048
      %317 = vst.msk [vmem:[%s176] sm:$0xff] %vm316, %v314
      %318 = vst.msk [vmem:[%s176 + $0x8] sm:$0xff] %vm316, %v315
      %s319 = smul.u32 2, %s17
      %p320 = scmp.lt.s32.totalorder %s319, 15
      %s321 = scalar_select %p320, %s319, 15
      %p322 = scmp.lt.s32.totalorder %s18, 0
      %s323 = scalar_select %p322, %s18, 0
      %s324 = sadd.s32 %s323, %s321
      %s325 = smul.addr %s324, 8
      %s326 = scalar_lea.vmem %s2, %s325
      // Predicated region
      $region29: #{tpu_custom_call.1} parent=27 // pred_check
        %p327 = pneg %p94
      $region30: #{tpu_custom_call.1} parent=27 // pred_check_branch
        %329 = sbr.rel (%p327) target = $region32
      $region31: #{tpu_custom_call.1} parent=27 // pred_region
        %s330 = smul.u32 2, %s17
      $region32: #{tpu_custom_call.1} parent=27 // pred_fallthru
        _
    $region28: #{tpu_custom_call.1} parent=5 // pred_fallthru
      _
    %p331 = scmp.le.s32.totalorder 2, %s8
    // Predicated region
    $region33: #{tpu_custom_call.1} parent=5 // pred_check
      %p332 = pneg %p331
    $region34: #{tpu_custom_call.1} parent=5 // pred_check_branch
      %334 = sbr.rel (%p332) target = $region36
    $region35: #{tpu_custom_call.1} parent=5 // pred_region
      %s335 = ssub.s32 %s8, 2
      // Predicated region
      $region37: #{tpu_custom_call.1} parent=35 // pred_check
        %p336 = pneg %p100
      $region38: #{tpu_custom_call.1} parent=35 // pred_check_branch
        %338 = sbr.rel (%p336) target = $region40
      $region39: #{tpu_custom_call.1} parent=35 // pred_region
        %s339 = smul.u32 2, %s19
        %p340 = scmp.lt.s32.totalorder %s339, 15
        %s341 = scalar_select %p340, %s339, 15
        %p342 = scmp.lt.s32.totalorder %s20, 0
        %s343 = scalar_select %p342, %s20, 0
        %s344 = sadd.s32 %s343, %s341
        %s345 = smul.addr %s344, 8
        %s346 = scalar_lea.vmem %s2, %s345
      $region40: #{tpu_custom_call.1} parent=35 // pred_fallthru
        _
    $region36: #{tpu_custom_call.1} parent=5 // pred_fallthru
      _
  $region6: #{tpu_custom_call.1} parent=0 // loop_footer
    %s12 = sadd.s32 1, %s8
  $region7: #{tpu_custom_call.1} parent=0 // loop_footer_branch
    %7 = sbr.rel target = $region3
  $region8: #{tpu_custom_call.1} parent=0 // loop_exit
    _

</llo_original>
